<compile_context>
chip_gen: v7x
topology: tpu7x:2x2x1
jax: 0.10.0
libtpu: 0.0.40
codegen_flags: <defaults>
</compile_context>

<pallas_src>
import functools

import jax
import jax.numpy as jnp
from jax.experimental import pallas as pl
from jax.experimental.pallas import tpu as pltpu

_LANES = 128
_TARGET_BLOCK_BYTES = 4 * 1024 * 1024      # per-buffer DMA block target (2-D path)
_TARGET_BLOCK_BYTES_1D = 512 * 1024        # conservative budget for the rare 1-D fallback
_MIN_SPLIT_BYTES = 512 * 1024              # below this, keep a single block (grid=1)
_VMEM_LIMIT_BYTES = 32 * 1024 * 1024       # raise v5e's 16 MiB scoped-VMEM default


def _custom_sigmoid_kernel(x_ref, o_ref, *, scale, inv_pow):
    # Compute in f32 regardless of I/O dtype (preserves numerics; v5e has no
    # bf16 VPU/EUP path). exp lowers to the EUP, essentially free here since
    # the kernel is HBM-bandwidth bound.
    x = x_ref[...].astype(jnp.float32)
    s = scale / (1.0 + jnp.exp(-x * inv_pow))
    o_ref[...] = jnp.minimum(s, 1.0).astype(o_ref.dtype)


def _min_sublane_multiple(dtype):
    itemsize = jnp.dtype(dtype).itemsize
    if itemsize >= 4:
        return 8
    if itemsize == 2:
        return 16
    return 32


def _round_up(v, m):
    return ((v + m - 1) // m) * m


def _pick_block_rows(rows, itemsize, sub, target_bytes):
    """Rows (of 128 lanes) per block, sized by a byte budget.

    Guarantees the returned value either equals `rows` (full dim) or is a
    multiple of `sub`, and that arrays above _MIN_SPLIT_BYTES are split into
    an even number (>= 2) of grid steps so both TensorCores on v7x get work.
    """
    bytes_per_row = _LANES * itemsize
    total_bytes = rows * bytes_per_row
    target_rows = max(sub, (target_bytes // bytes_per_row) // sub * sub)
    if rows <= sub or total_bytes < _MIN_SPLIT_BYTES:
        return rows                          # tiny tensor: one full block
    nsteps = max(2, pl.cdiv(rows, target_rows))
    if nsteps % 2:
        nsteps += 1                          # even step count -> balanced megacore split
    return min(rows, _round_up(pl.cdiv(rows, nsteps), sub))


def custom_sigmoid(x, temp):
    """Pallas implementation of CustomSigmoid.forward(x, temp).

    x:    any-shape float array (NCHW in the reference usage), any float dtype.
    temp: Python scalar (resolved at trace time, as in the PyTorch module).
    """
    temp = float(temp)
    scale = (temp + 1.0) if temp <= 1.0 else 2.0
    inv_pow = 1.0 / (10.0 ** temp)

    orig_shape = x.shape
    n = x.size
    if n == 0:
        return x

    itemsize = jnp.dtype(x.dtype).itemsize
    sub = _min_sublane_multiple(x.dtype)
    kernel = functools.partial(_custom_sigmoid_kernel, scale=scale, inv_pow=inv_pow)
    cost = pl.CostEstimate(flops=5 * n, transcendentals=n,
                           bytes_accessed=2 * n * itemsize)
    cparams = pltpu.CompilerParams(
        dimension_semantics=("parallel",),
        vmem_limit_bytes=_VMEM_LIMIT_BYTES,
    )

    x_flat = jnp.ravel(x)  # free (row-major) reshape

    if n % _LANES == 0:
        # Main path: lane-dense (rows, 128) slab, no-copy reshape.
        rows = n // _LANES
        x2d = x_flat.reshape(rows, _LANES)
        block_rows = _pick_block_rows(rows, itemsize, sub, _TARGET_BLOCK_BYTES)
        grid = (pl.cdiv(rows, block_rows),)
        out = pl.pallas_call(
            kernel,
            out_shape=jax.ShapeDtypeStruct((rows, _LANES), x.dtype),
            grid_spec=pltpu.PrefetchScalarGridSpec(
                num_scalar_prefetch=0,
                grid=grid,
                in_specs=[pl.BlockSpec((block_rows, _LANES), lambda i: (i, 0))],
                out_specs=pl.BlockSpec((block_rows, _LANES), lambda i: (i, 0)),
            ),
            compiler_params=cparams,
            cost_estimate=cost,
        )(x2d)
        return out.reshape(orig_shape)

    # Fallback (numel % 128 != 0): run directly over the flat 1-D array with a
    # lane-multiple block; Pallas masks the partial last block. No jnp.pad /
    # trailing-slice passes -> no extra HBM traffic outside the kernel.
    rows_ceil = pl.cdiv(n, _LANES)
    block_rows = _pick_block_rows(rows_ceil, itemsize, sub, _TARGET_BLOCK_BYTES_1D)
    if block_rows >= rows_ceil:
        block_elems = n                      # single full-dim block
    else:
        block_elems = block_rows * _LANES    # multiple of 128; last block masked
    grid = (pl.cdiv(n, block_elems),)
    out = pl.pallas_call(
        kernel,
        out_shape=jax.ShapeDtypeStruct((n,), x.dtype),
        grid_spec=pltpu.PrefetchScalarGridSpec(
            num_scalar_prefetch=0,
            grid=grid,
            in_specs=[pl.BlockSpec((block_elems,), lambda i: (i,))],
            out_specs=pl.BlockSpec((block_elems,), lambda i: (i,)),
        ),
        compiler_params=cparams,
        cost_estimate=cost,
    )(x_flat)
    return out.reshape(orig_shape)


def _reference(x, temp):
    scale = (temp + 1.0) if temp <= 1.0 else 2.0
    out = scale / (1.0 + jnp.exp(-x / (10.0 ** temp)))
    return jnp.minimum(out, 1.0)


if __name__ == "__main__":
    key = jax.random.PRNGKey(0)
    k0, k1, k2 = jax.random.split(key, 3)

    # NCHW input, small shapes consistent with a BERT-gate style usage.
    x = jax.random.normal(k0, (2, 4, 16, 16), dtype=jnp.float32) * 5.0
    for temp in (0.5, 1.0, 2.0):
        out = jax.block_until_ready(custom_sigmoid(x, temp))
        ref = _reference(x, float(temp))
        assert out.shape == x.shape and out.dtype == x.dtype
        assert jnp.max(jnp.abs(out - ref)) < 1e-5, f"mismatch at temp={temp}"

    # bf16 path: native-dtype I/O, f32 math in-kernel (byte-budget block sizing).
    x_bf16 = x.astype(jnp.bfloat16)
    out_bf = jax.block_until_ready(custom_sigmoid(x_bf16, 0.5))
    ref_bf = _reference(x_bf16.astype(jnp.float32), 0.5)
    assert out_bf.shape == x_bf16.shape and out_bf.dtype == jnp.bfloat16
    assert jnp.max(jnp.abs(out_bf.astype(jnp.float32) - ref_bf)) < 1e-2

    # Mid-size tensor: exercises the >=2 even grid-step (megacore) path.
    x_mid = jax.random.normal(k1, (4, 8, 64, 64), dtype=jnp.float32) * 5.0
    out_mid = jax.block_until_ready(custom_sigmoid(x_mid, 1.0))
    ref_mid = _reference(x_mid, 1.0)
    assert jnp.max(jnp.abs(out_mid - ref_mid)) < 1e-5

    # Awkward size (numel not a multiple of 128): 1-D masked-block fallback,
    # no pad/slice HBM passes.
    x_odd = jax.random.normal(k2, (3, 5, 7, 11), jnp.float32) * 5.0
    out_odd = jax.block_until_ready(custom_sigmoid(x_odd, 2.0))
    ref_odd = _reference(x_odd, 2.0)
    assert out_odd.shape == x_odd.shape
    assert jnp.max(jnp.abs(out_odd - ref_odd)) < 1e-5

    print("KERNEL_OK")
</pallas_src>

<mosaic_0001>
module attributes {stable_mosaic.version = 11 : i64} {
  func.func @_custom_sigmoid_kernel(%arg0: i32, %arg1: memref<16x128xf32, #tpu.memory_space<vmem>>, %arg2: memref<16x128xf32, #tpu.memory_space<vmem>>) attributes {dimension_semantics = [#tpu.dimension_semantics<parallel>], iteration_bounds = array<i64: 1>, scalar_prefetch = 0 : i64, scratch_operands = 0 : i64, tpu.core_type = #tpu.core_type<tc>, window_params = [{transform_indices = @transform_0, window_bounds = array<i64: 16, 128>}, {transform_indices = @transform_1, window_bounds = array<i64: 16, 128>}]} {
    %c0 = arith.constant 0 : index
    %c0_0 = arith.constant 0 : index
    %0 = vector.load %arg1[%c0, %c0_0] : memref<16x128xf32, #tpu.memory_space<vmem>>, vector<16x128xf32>
    %cst = arith.constant 0.000000e+00 : f32
    %1 = vector.broadcast %cst : f32 to vector<16x128xf32>
    %2 = arith.subf %1, %0 : vector<16x128xf32>
    %cst_1 = arith.constant 0.316227764 : f32
    %3 = vector.broadcast %cst_1 : f32 to vector<16x128xf32>
    %4 = arith.mulf %2, %3 : vector<16x128xf32>
    %5 = math.exp %4 : vector<16x128xf32>
    %cst_2 = arith.constant 1.000000e+00 : f32
    %6 = vector.broadcast %cst_2 : f32 to vector<16x128xf32>
    %7 = arith.addf %6, %5 : vector<16x128xf32>
    %cst_3 = arith.constant 1.500000e+00 : f32
    %8 = vector.broadcast %cst_3 : f32 to vector<16x128xf32>
    %9 = arith.divf %8, %7 : vector<16x128xf32>
    %cst_4 = arith.constant 1.000000e+00 : f32
    %10 = vector.broadcast %cst_4 : f32 to vector<16x128xf32>
    %11 = arith.minimumf %9, %10 : vector<16x128xf32>
    %c0_5 = arith.constant 0 : index
    %c0_6 = arith.constant 0 : index
    %12 = vector.load %arg2[%c0_5, %c0_6] : memref<16x128xf32, #tpu.memory_space<vmem>>, vector<16x128xf32>
    tpu.vector_store %arg2[%c0_5, %c0_6], %11 {strides = array<i32>} : memref<16x128xf32, #tpu.memory_space<vmem>>, vector<16x128xf32>,
    return
  }
  func.func @transform_0(%arg0: i32) -> (i32, i32) {
    %c0_i32 = arith.constant 0 : i32
    %c0_i32_0 = arith.constant 0 : i32
    return %arg0, %c0_i32 : i32, i32
  }
  func.func @transform_1(%arg0: i32) -> (i32, i32) {
    %c0_i32 = arith.constant 0 : i32
    %c0_i32_0 = arith.constant 0 : i32
    return %arg0, %c0_i32 : i32, i32
  }
}

</mosaic_0001>

<llo_original>
// kernel: tpu_custom_call.1
$region0: #{tpu_custom_call.1}
  #allocation0 [shape = 'u32[]', space=smem, size = 0x4, offset = 0x4, fixed_abs, tag = 'smem constant byte address 0x4 - core index']
  #allocation1 [shape = 'u32[144,128]{1,0:T(1,128)}', space=vmem, size = 0x12000, scoped, tag = 'internal scratch']
  %s0 = inlined_call_operand.hbm [shape: f32[16,128], index: 0, kind: input, shape index: {}]
  %s1 = inlined_call_operand.hbm [shape: f32[16,128], index: 1, kind: output, shape index: {}]
  %s2 = sld [smem:[#allocation0]]
  $region18: #{tpu_custom_call.1} parent=0
    _
  %s4 = ssub.s32 1, %s2
  %s5 = scalar_select 0, %s4, %s2
  $region1: #{tpu_custom_call.1} parent=0
    #allocation2 [shape = 'u8[8192]{0}', space=vmem, size = 0x2000, scoped, tag = 'input window, operand 0, single buffered']
    #allocation3 [shape = 's32[1]{0}', space=sflag, size = 0x4, scoped, tag = 'scoped memory for tpu_custom_call.1']
    #allocation4 [shape = 's32[1]{0}', space=sflag, size = 0x4, scoped, tag = 'scoped memory for tpu_custom_call.1']
    #allocation5 [shape = 'u8[8192]{0}', space=vmem, size = 0x2000, scoped, tag = 'output window, operand 0, single buffered']
    %6 = vsyncpa [#allocation3], 0
    %7 = vsyncpa [#allocation4], 0
    // Predicated region
    $region2: #{tpu_custom_call.1} parent=1 // pred_check
      _
    $region3: #{tpu_custom_call.1} parent=1 // pred_check_branch
      %9 = sbr.rel (0) target = $region5
    $region4: #{tpu_custom_call.1} parent=1 // pred_region
      %s11 = ssub.s32 256, 256
      %12 = vsyncadd [#allocation3], %s11
      %s13 = sshll.u32 [#allocation2], 4
      %s14 = int_to_ptr.vmem [resolvable:$true] %s13
      %19 = dma.hbm_to_vmem [thread:$0]  %s0, 256, %s14, [#allocation3], 128, 128, 8
    $region5: #{tpu_custom_call.1} parent=1 // pred_fallthru
      _
    // Predicated region
    $region6: #{tpu_custom_call.1} parent=1 // pred_check
      _
    $region7: #{tpu_custom_call.1} parent=1 // pred_check_branch
      %21 = sbr.rel (0) target = $region9
    $region8: #{tpu_custom_call.1} parent=1 // pred_region
      %22 = dma.done [#allocation3], 256
    $region9: #{tpu_custom_call.1} parent=1 // pred_fallthru
      _
    %v23 = vld [vmem:[#allocation2] sm:$0xff]
    %v24 = vld [vmem:[#allocation2 + $0x8] sm:$0xff]
    %v25 = vsub.f32 0.0, %v23
    %v26 = vsub.f32 0.0, %v24
    %v27 = vmul.f32 %v25, 0.31622776
    %v28 = vmul.f32 %v26, 0.31622776
    %v29 = vmul.f32 %v27, 1.442695
    %v30 = vpow.pop %v29
    %v31 = vmul.f32 %v28, 1.442695
    %v32 = vpow.pop %v31
    %v33 = vadd.f32 %v30, 1.0
    %v34 = vadd.f32 %v32, 1.0
    %v35 = vrcp.pop %v33
    %v36 = vmul.f32 1.5, %v35
    %v37 = vrcp.pop %v34
    %v38 = vmul.f32 1.5, %v37
    %v39 = vmin.f32 %v36, 1.0
    %v40 = vmin.f32 %v38, 1.0
    %41 = vst [vmem:[#allocation5] sm:$0xff] %v39
    %42 = vst [vmem:[#allocation5 + $0x8] sm:$0xff] %v40
    // Predicated region
    $region10: #{tpu_custom_call.1} parent=1 // pred_check
      _
    $region11: #{tpu_custom_call.1} parent=1 // pred_check_branch
      %44 = sbr.rel (0) target = $region13
    $region12: #{tpu_custom_call.1} parent=1 // pred_region
      %s46 = ssub.s32 256, 256
      %47 = vsyncadd [#allocation4], %s46
      %s48 = sshll.u32 [#allocation5], 4
      %s49 = int_to_ptr.vmem [resolvable:$true] %s48
      %54 = dma.vmem_to_hbm [thread:$0]  %s49, 256, %s1, [#allocation4], 128, 128, 8
    $region13: #{tpu_custom_call.1} parent=1 // pred_fallthru
      _
    // Predicated region
    $region14: #{tpu_custom_call.1} parent=1 // pred_check
      _
    $region15: #{tpu_custom_call.1} parent=1 // pred_check_branch
      %56 = sbr.rel (0) target = $region17
    $region16: #{tpu_custom_call.1} parent=1 // pred_region
      %57 = dma.done [#allocation4], 256
    $region17: #{tpu_custom_call.1} parent=1 // pred_fallthru
      _
    %58 = vsyncpa [#allocation3], 1
    %59 = vsyncpa [#allocation4], 1

</llo_original>
